<compile_context>
chip_gen: v6e
topology: v6e:2x2x1
jax: 0.10.0
libtpu: 0.0.40
codegen_flags: <defaults>
</compile_context>

<pallas_src>
import functools

import jax
import jax.numpy as jnp
from jax.experimental import pallas as pl
from jax.experimental.pallas import tpu as pltpu


def _round_up(x, m):
    return (x + m - 1) // m * m


def vae_forward_kernel(x_ref,
                       we0_ref, be0_ref,
                       we1_ref, be1_ref,
                       wml_ref, bml_ref,
                       wd0_ref, bd0_ref,
                       wd1_ref, bd1_ref,
                       wd2_ref, bd2_ref,
                       out_ref,
                       *, max_action, state_dim, action_dim, latent_dim,
                       mxu_dtype):
    S, A, L = state_dim, action_dim, latent_dim

    # Single batch-tiled input slab: [ state | action | eps ]
    x = x_ref[...]                       # [TB, S+A+L]
    sa = x[:, :S + A]                    # encoder input  (state||action)
    s = x[:, :S]                         # decoder state part
    eps = x[:, S + A:]                   # rsample noise

    def mm(a, w_ref):
        # Optional bf16 operand cast for v6e/v7x MXUs; f32 accumulation always.
        return jnp.dot(a.astype(mxu_dtype), w_ref[...].astype(mxu_dtype),
                       preferred_element_type=jnp.float32)

    # ---------------- encoder MLP: Linear+ReLU, Linear+ReLU, Linear ----------
    h = jnp.maximum(mm(sa, we0_ref) + be0_ref[...], 0.0)
    h = jnp.maximum(mm(h, we1_ref) + be1_ref[...], 0.0)
    # chunk(enc_out, 2, dim=-1) realized as one fused projection + lane slice
    ml = mm(h, wml_ref) + bml_ref[...]
    mu = ml[:, :L]
    logstd = jnp.clip(ml[:, L:], -4.0, 15.0)
    std = jnp.exp(logstd)

    # ---------------- reparameterized sample ---------------------------------
    z = mu + std * eps

    # ---------------- decoder MLP: Linear+ReLU, Linear+ReLU, Linear ----------
    # cat([state, z]) built in-kernel (lane concat) -> single fused matmul.
    sz = jnp.concatenate([s, z], axis=-1)               # [TB, S+L]
    g = jnp.maximum(mm(sz, wd0_ref) + bd0_ref[...], 0.0)
    g = jnp.maximum(mm(g, wd1_ref) + bd1_ref[...], 0.0)
    act = max_action * jnp.tanh(mm(g, wd2_ref) + bd2_ref[...])

    # ---------------- single full-width packed store -------------------------
    # layout: [ mu (L) | std (L) | action (A) ]  -- exactly 2L+A lanes, no pad.
    out_ref[...] = jnp.concatenate([mu, std, act], axis=-1)


def vae_forward(state, action, eps, params, max_action=1.0,
                batch_tile=1024, mxu_dtype=jnp.float32):
    """Fused VAE forward. Returns (mu, std, action_out)."""
    B, S = state.shape
    A = action.shape[-1]
    L = 2 * A                       # latent_dim
    assert eps.shape == (B, L)
    P = 2 * L + A                   # packed output width (mu | std | action)
    D_in = S + A + L                # packed input width  (state | action | eps)

    (we0, be0, we1, be1, wml, bml, wd0, bd0, wd1, bd1, wd2, bd2) = params

    # One input slab, concatenated once in XLA.
    x = jnp.concatenate([state, action, eps], axis=-1)      # [B, S+A+L]

    # Pad batch only to a multiple of 8 sublanes (not to a multiple of TB).
    B8 = _round_up(B, 8)
    if B8 != B:
        x = jnp.pad(x, ((0, B8 - B), (0, 0)))

    # Tile selection: big tiles (amortize per-step overhead), but capped near
    # ceil(B/2) so there are >= 2 grid steps when possible (v7x 2-TC sharding).
    TB = min(batch_tile, max(8, _round_up(pl.cdiv(B8, 2), 8)))
    grid = (pl.cdiv(B8, TB),)       # ragged last tile handled by Pallas

    def batch_spec(width):
        return pl.BlockSpec((TB, width), lambda i: (i, 0))

    def const_spec(arr):
        # Full-array block, constant index -> DMA'd once, VMEM-resident.
        return pl.BlockSpec(arr.shape, lambda i: (0, 0))

    weights = (we0, be0, we1, be1, wml, bml, wd0, bd0, wd1, bd1, wd2, bd2)

    fn = pl.pallas_call(
        functools.partial(vae_forward_kernel, max_action=max_action,
                          state_dim=S, action_dim=A, latent_dim=L,
                          mxu_dtype=mxu_dtype),
        grid=grid,
        in_specs=[batch_spec(D_in)] + [const_spec(w) for w in weights],
        out_specs=pl.BlockSpec((TB, P), lambda i: (i, 0)),
        out_shape=jax.ShapeDtypeStruct((B8, P), jnp.float32),
        compiler_params=pltpu.CompilerParams(
            dimension_semantics=("parallel",)),
    )
    packed = fn(x, *weights)

    mu = packed[:B, :L]
    std = packed[:B, L:2 * L]
    action_out = packed[:B, 2 * L:2 * L + A]
    return mu, std, action_out


def make_params(key, state_dim, action_dim, features):
    """Deterministic synthetic weights, already in the fused layout.

    Matches VAE with vae_layers=2: encoder MLP(S+A -> F -> F -> 2*latent),
    decoder MLP(S+latent -> F -> F -> A), latent = 2*A.
    """
    latent_dim = 2 * action_dim
    dims = [
        ("we0", (state_dim + action_dim, features)), ("be0", (1, features)),
        ("we1", (features, features)), ("be1", (1, features)),
        ("wml", (features, 2 * latent_dim)), ("bml", (1, 2 * latent_dim)),
        ("wd0", (state_dim + latent_dim, features)), ("bd0", (1, features)),
        ("wd1", (features, features)), ("bd1", (1, features)),
        ("wd2", (features, action_dim)), ("bd2", (1, action_dim)),
    ]
    keys = jax.random.split(key, len(dims))
    return tuple(0.1 * jax.random.normal(k, shape, dtype=jnp.float32)
                 for k, (_, shape) in zip(keys, dims))


if __name__ == "__main__":
    # Small shapes consistent with the module: state_dim=16, action_dim=8,
    # latent_dim = 2*action_dim = 16, vae_features=32, vae_layers=2.
    # batch=24 exercises a 2-step grid with a ragged last tile (TB=16).
    B, S, A, F = 24, 16, 8, 32
    L = 2 * A
    max_action = 1.0

    root = jax.random.PRNGKey(0)
    k_state, k_action, k_eps, k_params = jax.random.split(root, 4)

    state = jax.random.normal(k_state, (B, S), dtype=jnp.float32)
    action = jax.random.normal(k_action, (B, A), dtype=jnp.float32)
    # rsample noise eps ~ Normal(0,1); drawn host-side for reproducibility.
    eps = jax.random.normal(k_eps, (B, L), dtype=jnp.float32)

    params = make_params(k_params, S, A, F)

    mu, std, action_out = vae_forward(state, action, eps, params,
                                      max_action=max_action)
    jax.block_until_ready((mu, std, action_out))

    # Pure-JAX reference of the same math.
    (we0, be0, we1, be1, wml, bml, wd0, bd0, wd1, bd1, wd2, bd2) = params
    sa = jnp.concatenate([state, action], axis=-1)
    h = jax.nn.relu(sa @ we0 + be0)
    h = jax.nn.relu(h @ we1 + be1)
    ml = h @ wml + bml
    mu_r = ml[:, :L]
    std_r = jnp.exp(jnp.clip(ml[:, L:], -4.0, 15.0))
    z_r = mu_r + std_r * eps
    sz = jnp.concatenate([state, z_r], axis=-1)
    g = jax.nn.relu(sz @ wd0 + bd0)
    g = jax.nn.relu(g @ wd1 + bd1)
    act_r = max_action * jnp.tanh(g @ wd2 + bd2)

    assert jnp.allclose(mu, mu_r, atol=3e-5)
    assert jnp.allclose(std, std_r, atol=3e-5)
    assert jnp.allclose(action_out, act_r, atol=3e-5)

    print("KERNEL_OK")
</pallas_src>

<mosaic_0001>
module attributes {stable_mosaic.version = 11 : i64} {
  func.func @vae_forward_kernel(%arg0: i32, %arg1: memref<16x40xf32, #tpu.memory_space<vmem>>, %arg2: memref<24x32xf32, #tpu.memory_space<vmem>>, %arg3: memref<1x32xf32, #tpu.memory_space<vmem>>, %arg4: memref<32x32xf32, #tpu.memory_space<vmem>>, %arg5: memref<1x32xf32, #tpu.memory_space<vmem>>, %arg6: memref<32x32xf32, #tpu.memory_space<vmem>>, %arg7: memref<1x32xf32, #tpu.memory_space<vmem>>, %arg8: memref<32x32xf32, #tpu.memory_space<vmem>>, %arg9: memref<1x32xf32, #tpu.memory_space<vmem>>, %arg10: memref<32x32xf32, #tpu.memory_space<vmem>>, %arg11: memref<1x32xf32, #tpu.memory_space<vmem>>, %arg12: memref<32x8xf32, #tpu.memory_space<vmem>>, %arg13: memref<1x8xf32, #tpu.memory_space<vmem>>, %arg14: memref<16x40xf32, #tpu.memory_space<vmem>>) attributes {dimension_semantics = [#tpu.dimension_semantics<parallel>], iteration_bounds = array<i64: 2>, scalar_prefetch = 0 : i64, scratch_operands = 0 : i64, tpu.core_type = #tpu.core_type<tc>, window_params = [{transform_indices = @transform_0, window_bounds = array<i64: 16, 40>}, {pipeline_mode = #tpu.pipeline_mode<synchronous>, transform_indices = @transform_1, window_bounds = array<i64: 24, 32>}, {pipeline_mode = #tpu.pipeline_mode<synchronous>, transform_indices = @transform_2, window_bounds = array<i64: 1, 32>}, {pipeline_mode = #tpu.pipeline_mode<synchronous>, transform_indices = @transform_3, window_bounds = array<i64: 32, 32>}, {pipeline_mode = #tpu.pipeline_mode<synchronous>, transform_indices = @transform_4, window_bounds = array<i64: 1, 32>}, {pipeline_mode = #tpu.pipeline_mode<synchronous>, transform_indices = @transform_5, window_bounds = array<i64: 32, 32>}, {pipeline_mode = #tpu.pipeline_mode<synchronous>, transform_indices = @transform_6, window_bounds = array<i64: 1, 32>}, {pipeline_mode = #tpu.pipeline_mode<synchronous>, transform_indices = @transform_7, window_bounds = array<i64: 32, 32>}, {pipeline_mode = #tpu.pipeline_mode<synchronous>, transform_indices = @transform_8, window_bounds = array<i64: 1, 32>}, {pipeline_mode = #tpu.pipeline_mode<synchronous>, transform_indices = @transform_9, window_bounds = array<i64: 32, 32>}, {pipeline_mode = #tpu.pipeline_mode<synchronous>, transform_indices = @transform_10, window_bounds = array<i64: 1, 32>}, {pipeline_mode = #tpu.pipeline_mode<synchronous>, transform_indices = @transform_11, window_bounds = array<i64: 32, 8>}, {pipeline_mode = #tpu.pipeline_mode<synchronous>, transform_indices = @transform_12, window_bounds = array<i64: 1, 8>}, {transform_indices = @transform_13, window_bounds = array<i64: 16, 40>}]} {
    %c0 = arith.constant 0 : index
    %c0_0 = arith.constant 0 : index
    %0 = vector.load %arg1[%c0, %c0_0] : memref<16x40xf32, #tpu.memory_space<vmem>>, vector<16x40xf32>
    %1 = vector.extract_strided_slice %0 {offsets = [0, 0], sizes = [16, 24], strides = [1, 1]} : vector<16x40xf32> to vector<16x24xf32>
    %2 = vector.extract_strided_slice %0 {offsets = [0, 0], sizes = [16, 16], strides = [1, 1]} : vector<16x40xf32> to vector<16x16xf32>
    %3 = vector.extract_strided_slice %0 {offsets = [0, 24], sizes = [16, 16], strides = [1, 1]} : vector<16x40xf32> to vector<16x16xf32>
    %c0_1 = arith.constant 0 : index
    %c0_2 = arith.constant 0 : index
    %4 = vector.load %arg2[%c0_1, %c0_2] : memref<24x32xf32, #tpu.memory_space<vmem>>, vector<24x32xf32>
    %cst = arith.constant dense<0.000000e+00> : vector<16x32xf32>
    %5 = tpu.matmul %1, %4, %cst {dimension_numbers = #tpu.dot_dimension_numbers<[1], [0], [0], [1], [0, 0, 1, 1], [], []>} : vector<16x24xf32>, vector<24x32xf32>, vector<16x32xf32> -> vector<16x32xf32>
    %c0_3 = arith.constant 0 : index
    %c0_4 = arith.constant 0 : index
    %6 = vector.load %arg3[%c0_3, %c0_4] : memref<1x32xf32, #tpu.memory_space<vmem>>, vector<1x32xf32>
    %7 = vector.broadcast %6 : vector<1x32xf32> to vector<16x32xf32>
    %8 = arith.addf %5, %7 : vector<16x32xf32>
    %cst_5 = arith.constant 0.000000e+00 : f32
    %9 = vector.broadcast %cst_5 : f32 to vector<16x32xf32>
    %10 = arith.maximumf %8, %9 : vector<16x32xf32>
    %c0_6 = arith.constant 0 : index
    %c0_7 = arith.constant 0 : index
    %11 = vector.load %arg4[%c0_6, %c0_7] : memref<32x32xf32, #tpu.memory_space<vmem>>, vector<32x32xf32>
    %cst_8 = arith.constant dense<0.000000e+00> : vector<16x32xf32>
    %12 = tpu.matmul %10, %11, %cst_8 {dimension_numbers = #tpu.dot_dimension_numbers<[1], [0], [0], [1], [0, 0, 1, 1], [], []>} : vector<16x32xf32>, vector<32x32xf32>, vector<16x32xf32> -> vector<16x32xf32>
    %c0_9 = arith.constant 0 : index
    %c0_10 = arith.constant 0 : index
    %13 = vector.load %arg5[%c0_9, %c0_10] : memref<1x32xf32, #tpu.memory_space<vmem>>, vector<1x32xf32>
    %14 = vector.broadcast %13 : vector<1x32xf32> to vector<16x32xf32>
    %15 = arith.addf %12, %14 : vector<16x32xf32>
    %cst_11 = arith.constant 0.000000e+00 : f32
    %16 = vector.broadcast %cst_11 : f32 to vector<16x32xf32>
    %17 = arith.maximumf %15, %16 : vector<16x32xf32>
    %c0_12 = arith.constant 0 : index
    %c0_13 = arith.constant 0 : index
    %18 = vector.load %arg6[%c0_12, %c0_13] : memref<32x32xf32, #tpu.memory_space<vmem>>, vector<32x32xf32>
    %cst_14 = arith.constant dense<0.000000e+00> : vector<16x32xf32>
    %19 = tpu.matmul %17, %18, %cst_14 {dimension_numbers = #tpu.dot_dimension_numbers<[1], [0], [0], [1], [0, 0, 1, 1], [], []>} : vector<16x32xf32>, vector<32x32xf32>, vector<16x32xf32> -> vector<16x32xf32>
    %c0_15 = arith.constant 0 : index
    %c0_16 = arith.constant 0 : index
    %20 = vector.load %arg7[%c0_15, %c0_16] : memref<1x32xf32, #tpu.memory_space<vmem>>, vector<1x32xf32>
    %21 = vector.broadcast %20 : vector<1x32xf32> to vector<16x32xf32>
    %22 = arith.addf %19, %21 : vector<16x32xf32>
    %23 = vector.extract_strided_slice %22 {offsets = [0, 0], sizes = [16, 16], strides = [1, 1]} : vector<16x32xf32> to vector<16x16xf32>
    %24 = vector.extract_strided_slice %22 {offsets = [0, 16], sizes = [16, 16], strides = [1, 1]} : vector<16x32xf32> to vector<16x16xf32>
    %cst_17 = arith.constant -4.000000e+00 : f32
    %cst_18 = arith.constant 1.500000e+01 : f32
    %25 = vector.broadcast %cst_17 : f32 to vector<16x16xf32>
    %26 = arith.maximumf %25, %24 : vector<16x16xf32>
    %27 = vector.broadcast %cst_18 : f32 to vector<16x16xf32>
    %28 = arith.minimumf %27, %26 : vector<16x16xf32>
    %29 = math.exp %28 : vector<16x16xf32>
    %30 = arith.mulf %29, %3 : vector<16x16xf32>
    %31 = arith.addf %23, %30 : vector<16x16xf32>
    %32 = tpu.concatenate %2, %31 in 1 : vector<16x16xf32>, vector<16x16xf32> -> vector<16x32xf32>
    %c0_19 = arith.constant 0 : index
    %c0_20 = arith.constant 0 : index
    %33 = vector.load %arg8[%c0_19, %c0_20] : memref<32x32xf32, #tpu.memory_space<vmem>>, vector<32x32xf32>
    %cst_21 = arith.constant dense<0.000000e+00> : vector<16x32xf32>
    %34 = tpu.matmul %32, %33, %cst_21 {dimension_numbers = #tpu.dot_dimension_numbers<[1], [0], [0], [1], [0, 0, 1, 1], [], []>} : vector<16x32xf32>, vector<32x32xf32>, vector<16x32xf32> -> vector<16x32xf32>
    %c0_22 = arith.constant 0 : index
    %c0_23 = arith.constant 0 : index
    %35 = vector.load %arg9[%c0_22, %c0_23] : memref<1x32xf32, #tpu.memory_space<vmem>>, vector<1x32xf32>
    %36 = vector.broadcast %35 : vector<1x32xf32> to vector<16x32xf32>
    %37 = arith.addf %34, %36 : vector<16x32xf32>
    %cst_24 = arith.constant 0.000000e+00 : f32
    %38 = vector.broadcast %cst_24 : f32 to vector<16x32xf32>
    %39 = arith.maximumf %37, %38 : vector<16x32xf32>
    %c0_25 = arith.constant 0 : index
    %c0_26 = arith.constant 0 : index
    %40 = vector.load %arg10[%c0_25, %c0_26] : memref<32x32xf32, #tpu.memory_space<vmem>>, vector<32x32xf32>
    %cst_27 = arith.constant dense<0.000000e+00> : vector<16x32xf32>
    %41 = tpu.matmul %39, %40, %cst_27 {dimension_numbers = #tpu.dot_dimension_numbers<[1], [0], [0], [1], [0, 0, 1, 1], [], []>} : vector<16x32xf32>, vector<32x32xf32>, vector<16x32xf32> -> vector<16x32xf32>
    %c0_28 = arith.constant 0 : index
    %c0_29 = arith.constant 0 : index
    %42 = vector.load %arg11[%c0_28, %c0_29] : memref<1x32xf32, #tpu.memory_space<vmem>>, vector<1x32xf32>
    %43 = vector.broadcast %42 : vector<1x32xf32> to vector<16x32xf32>
    %44 = arith.addf %41, %43 : vector<16x32xf32>
    %cst_30 = arith.constant 0.000000e+00 : f32
    %45 = vector.broadcast %cst_30 : f32 to vector<16x32xf32>
    %46 = arith.maximumf %44, %45 : vector<16x32xf32>
    %c0_31 = arith.constant 0 : index
    %c0_32 = arith.constant 0 : index
    %47 = vector.load %arg12[%c0_31, %c0_32] : memref<32x8xf32, #tpu.memory_space<vmem>>, vector<32x8xf32>
    %cst_33 = arith.constant dense<0.000000e+00> : vector<16x8xf32>
    %48 = tpu.matmul %46, %47, %cst_33 {dimension_numbers = #tpu.dot_dimension_numbers<[1], [0], [0], [1], [0, 0, 1, 1], [], []>} : vector<16x32xf32>, vector<32x8xf32>, vector<16x8xf32> -> vector<16x8xf32>
    %c0_34 = arith.constant 0 : index
    %c0_35 = arith.constant 0 : index
    %49 = vector.load %arg13[%c0_34, %c0_35] : memref<1x8xf32, #tpu.memory_space<vmem>>, vector<1x8xf32>
    %50 = vector.broadcast %49 : vector<1x8xf32> to vector<16x8xf32>
    %51 = arith.addf %48, %50 : vector<16x8xf32>
    %52 = math.tanh %51 : vector<16x8xf32>
    %cst_36 = arith.constant 1.000000e+00 : f32
    %53 = vector.broadcast %cst_36 : f32 to vector<16x8xf32>
    %54 = arith.mulf %53, %52 : vector<16x8xf32>
    %55 = tpu.concatenate %23, %29, %54 in 1 : vector<16x16xf32>, vector<16x16xf32>, vector<16x8xf32> -> vector<16x40xf32>
    %c0_37 = arith.constant 0 : index
    %c0_38 = arith.constant 0 : index
    %56 = vector.load %arg14[%c0_37, %c0_38] : memref<16x40xf32, #tpu.memory_space<vmem>>, vector<16x40xf32>
    tpu.vector_store %arg14[%c0_37, %c0_38], %55 {strides = array<i32>} : memref<16x40xf32, #tpu.memory_space<vmem>>, vector<16x40xf32>,
    return
  }
  func.func @transform_0(%arg0: i32) -> (i32, i32) {
    %c0_i32 = arith.constant 0 : i32
    %c0_i32_0 = arith.constant 0 : i32
    return %arg0, %c0_i32 : i32, i32
  }
  func.func @transform_1(%arg0: i32) -> (i32, i32) {
    %c0_i32 = arith.constant 0 : i32
    %c0_i32_0 = arith.constant 0 : i32
    %c0_i32_1 = arith.constant 0 : i32
    return %c0_i32, %c0_i32_0 : i32, i32
  }
  func.func @transform_2(%arg0: i32) -> (i32, i32) {
    %c0_i32 = arith.constant 0 : i32
    %c0_i32_0 = arith.constant 0 : i32
    %c0_i32_1 = arith.constant 0 : i32
    return %c0_i32, %c0_i32_0 : i32, i32
  }
  func.func @transform_3(%arg0: i32) -> (i32, i32) {
    %c0_i32 = arith.constant 0 : i32
    %c0_i32_0 = arith.constant 0 : i32
    %c0_i32_1 = arith.constant 0 : i32
    return %c0_i32, %c0_i32_0 : i32, i32
  }
  func.func @transform_4(%arg0: i32) -> (i32, i32) {
    %c0_i32 = arith.constant 0 : i32
    %c0_i32_0 = arith.constant 0 : i32
    %c0_i32_1 = arith.constant 0 : i32
    return %c0_i32, %c0_i32_0 : i32, i32
  }
  func.func @transform_5(%arg0: i32) -> (i32, i32) {
    %c0_i32 = arith.constant 0 : i32
    %c0_i32_0 = arith.constant 0 : i32
    %c0_i32_1 = arith.constant 0 : i32
    return %c0_i32, %c0_i32_0 : i32, i32
  }
  func.func @transform_6(%arg0: i32) -> (i32, i32) {
    %c0_i32 = arith.constant 0 : i32
    %c0_i32_0 = arith.constant 0 : i32
    %c0_i32_1 = arith.constant 0 : i32
    return %c0_i32, %c0_i32_0 : i32, i32
  }
  func.func @transform_7(%arg0: i32) -> (i32, i32) {
    %c0_i32 = arith.constant 0 : i32
    %c0_i32_0 = arith.constant 0 : i32
    %c0_i32_1 = arith.constant 0 : i32
    return %c0_i32, %c0_i32_0 : i32, i32
  }
  func.func @transform_8(%arg0: i32) -> (i32, i32) {
    %c0_i32 = arith.constant 0 : i32
    %c0_i32_0 = arith.constant 0 : i32
    %c0_i32_1 = arith.constant 0 : i32
    return %c0_i32, %c0_i32_0 : i32, i32
  }
  func.func @transform_9(%arg0: i32) -> (i32, i32) {
    %c0_i32 = arith.constant 0 : i32
    %c0_i32_0 = arith.constant 0 : i32
    %c0_i32_1 = arith.constant 0 : i32
    return %c0_i32, %c0_i32_0 : i32, i32
  }
  func.func @transform_10(%arg0: i32) -> (i32, i32) {
    %c0_i32 = arith.constant 0 : i32
    %c0_i32_0 = arith.constant 0 : i32
    %c0_i32_1 = arith.constant 0 : i32
    return %c0_i32, %c0_i32_0 : i32, i32
  }
  func.func @transform_11(%arg0: i32) -> (i32, i32) {
    %c0_i32 = arith.constant 0 : i32
    %c0_i32_0 = arith.constant 0 : i32
    %c0_i32_1 = arith.constant 0 : i32
    return %c0_i32, %c0_i32_0 : i32, i32
  }
  func.func @transform_12(%arg0: i32) -> (i32, i32) {
    %c0_i32 = arith.constant 0 : i32
    %c0_i32_0 = arith.constant 0 : i32
    %c0_i32_1 = arith.constant 0 : i32
    return %c0_i32, %c0_i32_0 : i32, i32
  }
  func.func @transform_13(%arg0: i32) -> (i32, i32) {
    %c0_i32 = arith.constant 0 : i32
    %c0_i32_0 = arith.constant 0 : i32
    return %arg0, %c0_i32 : i32, i32
  }
}

</mosaic_0001>

<llo_original>
// kernel: tpu_custom_call.1
$region0: #{tpu_custom_call.1}
  #allocation0 [shape = 'u32[]', space=smem, size = 0x4, offset = 0x4, fixed_abs, tag = 'smem constant byte address 0x4 - core index']
  #allocation1 [shape = 'u32[144,128]{1,0:T(1,128)}', space=vmem, size = 0x12000, scoped, tag = 'internal scratch']
  %s0 = inlined_call_operand.hbm [shape: f32[24,40], index: 0, kind: input, shape index: {}]
  %s1 = inlined_call_operand.hbm [shape: f32[24,32], index: 1, kind: input, shape index: {}]
  %s2 = inlined_call_operand.vmem [shape: f32[1,32], index: 2, kind: input, shape index: {}]
  %s3 = inlined_call_operand.vmem [shape: f32[32,32], index: 3, kind: input, shape index: {}]
  %s4 = inlined_call_operand.vmem [shape: f32[1,32], index: 4, kind: input, shape index: {}]
  %s5 = inlined_call_operand.hbm [shape: f32[32,32], index: 5, kind: input, shape index: {}]
  %s6 = inlined_call_operand.vmem [shape: f32[1,32], index: 6, kind: input, shape index: {}]
  %s7 = inlined_call_operand.hbm [shape: f32[32,32], index: 7, kind: input, shape index: {}]
  %s8 = inlined_call_operand.vmem [shape: f32[1,32], index: 8, kind: input, shape index: {}]
  %s9 = inlined_call_operand.hbm [shape: f32[32,32], index: 9, kind: input, shape index: {}]
  %s10 = inlined_call_operand.vmem [shape: f32[1,32], index: 10, kind: input, shape index: {}]
  %s11 = inlined_call_operand.vmem [shape: f32[32,8], index: 11, kind: input, shape index: {}]
  %s12 = inlined_call_operand.vmem [shape: f32[1,8], index: 12, kind: input, shape index: {}]
  %s13 = inlined_call_operand.hbm [shape: f32[24,40], index: 13, kind: output, shape index: {}]
  %s14 = sld [smem:[#allocation0]]
  $region105: #{tpu_custom_call.1} parent=0
    _
  %s16 = ssub.s32 1, %s14
  %s17 = scalar_select 0, %s16, %s14
  $region1: #{tpu_custom_call.1} parent=0
    #allocation2 [shape = 'u8[16384]{0}', space=vmem, size = 0x4000, scoped, tag = 'input window, operand 0']
    #allocation3 [shape = 's32[2]{0}', space=sflag, size = 0x8, scoped, tag = 'scoped memory for tpu_custom_call.1']
    #allocation4 [shape = 's32[2]{0}', space=sflag, size = 0x8, scoped, tag = 'scoped memory for tpu_custom_call.1']
    #allocation5 [shape = 'u8[12288]{0}', space=vmem, size = 0x3000, scoped, tag = 'input window, operand 1, single buffered']
    #allocation6 [shape = 's32[1]{0}', space=sflag, size = 0x4, scoped, tag = 'scoped memory for tpu_custom_call.1']
    #allocation7 [shape = 'u8[16384]{0}', space=vmem, size = 0x4000, scoped, tag = 'input window, operand 5, single buffered']
    #allocation8 [shape = 'u8[16384]{0}', space=vmem, size = 0x4000, scoped, tag = 'input window, operand 7, single buffered']
    #allocation9 [shape = 's32[1]{0}', space=sflag, size = 0x4, scoped, tag = 'scoped memory for tpu_custom_call.1']
    #allocation10 [shape = 'u8[16384]{0}', space=vmem, size = 0x4000, scoped, tag = 'input window, operand 9, single buffered']
    #allocation11 [shape = 'u8[16384]{0}', space=vmem, size = 0x4000, scoped, tag = 'output window, operand 0']
    %18 = vsyncpa [#allocation3], 0
    %s19 = scalar_lea.sflag [#allocation3], 1
    %20 = vsyncpa %s19, 0
    %21 = vsyncpa [#allocation6], 0
    %22 = vsyncpa [#allocation9], 0
    %23 = vsyncpa [#allocation4], 0
    %s24 = scalar_lea.sflag [#allocation4], 1
    %25 = vsyncpa %s24, 0
    loop: start=0, step=1, limit=4
    $region2: #{tpu_custom_call.1} parent=1 // loop_pre_header
      _
    $region3: #{tpu_custom_call.1} parent=1 // loop_header
      %s27 = sphi 0, %s31
      %p28 = scmp.ge.s32.totalorder %s27, 4
      %s37 = sphi 0, %s39
      %s40 = sphi 0, %s37
      %s41 = sphi 0, %s40
      %s57 = sphi 0, %s41
      %s61 = sphi 0, %s61
      %s63 = sphi 0, %s61
      %s64 = sphi 0, %s63
      %s78 = sphi 0, %s64
      %s82 = sphi 0, %s82
      %s84 = sphi 0, %s82
      %s85 = sphi 0, %s84
      %s99 = sphi 0, %s85
      %s103 = sphi 0, %s103
      %s105 = sphi 0, %s103
      %s106 = sphi 0, %s105
      %s120 = sphi 0, %s106
      %s124 = sphi 0, %s124
      %s126 = sphi 0, %s124
      %s127 = sphi 0, %s126
      %s141 = sphi 0, %s127
      %s145 = sphi 0, %s145
      %s147 = sphi 0, %s145
      %s148 = sphi 0, %s147
      %s162 = sphi 0, %s148
      %s166 = sphi 0, %s166
      %s168 = sphi 0, %s166
      %s169 = sphi 0, %s168
      %s183 = sphi 0, %s169
      %s187 = sphi 0, %s187
      %s189 = sphi 0, %s187
      %s190 = sphi 0, %s189
      %s204 = sphi 0, %s190
      %s208 = sphi 0, %s208
      %s210 = sphi 0, %s208
      %s211 = sphi 0, %s210
      %s225 = sphi 0, %s211
      %s229 = sphi 0, %s229
      %s231 = sphi 0, %s229
      %s232 = sphi 0, %s231
      %s246 = sphi 0, %s232
      %s250 = sphi 0, %s250
      %s252 = sphi 0, %s250
      %s253 = sphi 0, %s252
      %s267 = sphi 0, %s253
      %s271 = sphi 0, %s271
      %s273 = sphi 0, %s271
      %s274 = sphi 0, %s273
      %s288 = sphi 0, %s274
      %s292 = sphi 0, %s292
      %s294 = sphi 0, %s292
      %s295 = sphi 0, %s294
      %s309 = sphi 0, %s295
      %s315 = sphi 0, %s317
      %s318 = sphi 0, %s315
      %s319 = sphi 0, %s318
      %s335 = sphi 0, %s319
    $region4: #{tpu_custom_call.1} parent=1 // loop_header_branch
      %30 = sbr.rel (%p28) target = $region8
    $region5: #{tpu_custom_call.1} parent=1 // loop_body
      %s32 = ssub.s32 %s27, 1
      %s33 = ssub.s32 %s27, 2
      %s34 = sadd.s32 %s27, 1
      %s35 = ssub.s32 %s27, %s34
      %p36 = scmp.eq.s32.totalorder %s35, 0
      %s38 = sadd.s32 %s37, 1
      %s39 = scalar_select %p36, %s37, %s38
      %p42 = pneg %p36
      %p43 = scmp.eq.s32.totalorder %s27, 1
      %p44 = por %p42, %p43
      %p45 = scmp.ne.s32.totalorder %s37, %s40
      %p46 = scmp.eq.s32.totalorder %s27, 0
      %p47 = por %p45, %p46
      %p48 = scmp.ne.s32.totalorder %s37, %s40
      %p49 = scmp.eq.s32.totalorder %s32, 1
      %p50 = por %p48, %p49
      %p51 = scmp.ne.s32.totalorder %s40, %s41
      %p52 = scmp.eq.s32.totalorder %s32, 0
      %p53 = por %p51, %p52
      %p54 = scmp.ne.s32.totalorder %s40, %s41
      %p55 = scmp.eq.s32.totalorder %s33, 1
      %p56 = por %p54, %p55
      %p58 = scmp.ne.s32.totalorder %s41, %s57
      %p59 = scmp.eq.s32.totalorder %s33, 0
      %p60 = por %p58, %p59
      %s62 = sadd.s32 %s61, 1
      %p65 = scmp.eq.s32.totalorder %s27, 1
      %p66 = scmp.ne.s32.totalorder %s61, %s63
      %p67 = scmp.eq.s32.totalorder %s27, 0
      %p68 = por %p66, %p67
      %p69 = scmp.ne.s32.totalorder %s61, %s63
      %p70 = scmp.eq.s32.totalorder %s32, 1
      %p71 = por %p69, %p70
      %p72 = scmp.ne.s32.totalorder %s63, %s64
      %p73 = scmp.eq.s32.totalorder %s32, 0
      %p74 = por %p72, %p73
      %p75 = scmp.ne.s32.totalorder %s63, %s64
      %p76 = scmp.eq.s32.totalorder %s33, 1
      %p77 = por %p75, %p76
      %p79 = scmp.ne.s32.totalorder %s64, %s78
      %p80 = scmp.eq.s32.totalorder %s33, 0
      %p81 = por %p79, %p80
      %s83 = sadd.s32 %s82, 1
      %p86 = scmp.eq.s32.totalorder %s27, 1
      %p87 = scmp.ne.s32.totalorder %s82, %s84
      %p88 = scmp.eq.s32.totalorder %s27, 0
      %p89 = por %p87, %p88
      %p90 = scmp.ne.s32.totalorder %s82, %s84
      %p91 = scmp.eq.s32.totalorder %s32, 1
      %p92 = por %p90, %p91
      %p93 = scmp.ne.s32.totalorder %s84, %s85
      %p94 = scmp.eq.s32.totalorder %s32, 0
      %p95 = por %p93, %p94
      %p96 = scmp.ne.s32.totalorder %s84, %s85
      %p97 = scmp.eq.s32.totalorder %s33, 1
      %p98 = por %p96, %p97
      %p100 = scmp.ne.s32.totalorder %s85, %s99
      %p101 = scmp.eq.s32.totalorder %s33, 0
      %p102 = por %p100, %p101
      %s104 = sadd.s32 %s103, 1
      %p107 = scmp.eq.s32.totalorder %s27, 1
      %p108 = scmp.ne.s32.totalorder %s103, %s105
      %p109 = scmp.eq.s32.totalorder %s27, 0
      %p110 = por %p108, %p109
      %p111 = scmp.ne.s32.totalorder %s103, %s105
      %p112 = scmp.eq.s32.totalorder %s32, 1
      %p113 = por %p111, %p112
      %p114 = scmp.ne.s32.totalorder %s105, %s106
      %p115 = scmp.eq.s32.totalorder %s32, 0
      %p116 = por %p114, %p115
      %p117 = scmp.ne.s32.totalorder %s105, %s106
      %p118 = scmp.eq.s32.totalorder %s33, 1
      %p119 = por %p117, %p118
      %p121 = scmp.ne.s32.totalorder %s106, %s120
      %p122 = scmp.eq.s32.totalorder %s33, 0
      %p123 = por %p121, %p122
      %s125 = sadd.s32 %s124, 1
      %p128 = scmp.eq.s32.totalorder %s27, 1
      %p129 = scmp.ne.s32.totalorder %s124, %s126
      %p130 = scmp.eq.s32.totalorder %s27, 0
      %p131 = por %p129, %p130
      %p132 = scmp.ne.s32.totalorder %s124, %s126
      %p133 = scmp.eq.s32.totalorder %s32, 1
      %p134 = por %p132, %p133
      %p135 = scmp.ne.s32.totalorder %s126, %s127
      %p136 = scmp.eq.s32.totalorder %s32, 0
      %p137 = por %p135, %p136
      %p138 = scmp.ne.s32.totalorder %s126, %s127
      %p139 = scmp.eq.s32.totalorder %s33, 1
      %p140 = por %p138, %p139
      %p142 = scmp.ne.s32.totalorder %s127, %s141
      %p143 = scmp.eq.s32.totalorder %s33, 0
      %p144 = por %p142, %p143
      %s146 = sadd.s32 %s145, 1
      %p149 = scmp.eq.s32.totalorder %s27, 1
      %p150 = scmp.ne.s32.totalorder %s145, %s147
      %p151 = scmp.eq.s32.totalorder %s27, 0
      %p152 = por %p150, %p151
      %p153 = scmp.ne.s32.totalorder %s145, %s147
      %p154 = scmp.eq.s32.totalorder %s32, 1
      %p155 = por %p153, %p154
      %p156 = scmp.ne.s32.totalorder %s147, %s148
      %p157 = scmp.eq.s32.totalorder %s32, 0
      %p158 = por %p156, %p157
      %p159 = scmp.ne.s32.totalorder %s147, %s148
      %p160 = scmp.eq.s32.totalorder %s33, 1
      %p161 = por %p159, %p160
      %p163 = scmp.ne.s32.totalorder %s148, %s162
      %p164 = scmp.eq.s32.totalorder %s33, 0
      %p165 = por %p163, %p164
      %s167 = sadd.s32 %s166, 1
      %p170 = scmp.eq.s32.totalorder %s27, 1
      %p171 = scmp.ne.s32.totalorder %s166, %s168
      %p172 = scmp.eq.s32.totalorder %s27, 0
      %p173 = por %p171, %p172
      %p174 = scmp.ne.s32.totalorder %s166, %s168
      %p175 = scmp.eq.s32.totalorder %s32, 1
      %p176 = por %p174, %p175
      %p177 = scmp.ne.s32.totalorder %s168, %s169
      %p178 = scmp.eq.s32.totalorder %s32, 0
      %p179 = por %p177, %p178
      %p180 = scmp.ne.s32.totalorder %s168, %s169
      %p181 = scmp.eq.s32.totalorder %s33, 1
      %p182 = por %p180, %p181
      %p184 = scmp.ne.s32.totalorder %s169, %s183
      %p185 = scmp.eq.s32.totalorder %s33, 0
      %p186 = por %p184, %p185
      %s188 = sadd.s32 %s187, 1
      %p191 = scmp.eq.s32.totalorder %s27, 1
      %p192 = scmp.ne.s32.totalorder %s187, %s189
      %p193 = scmp.eq.s32.totalorder %s27, 0
      %p194 = por %p192, %p193
      %p195 = scmp.ne.s32.totalorder %s187, %s189
      %p196 = scmp.eq.s32.totalorder %s32, 1
      %p197 = por %p195, %p196
      %p198 = scmp.ne.s32.totalorder %s189, %s190
      %p199 = scmp.eq.s32.totalorder %s32, 0
      %p200 = por %p198, %p199
      %p201 = scmp.ne.s32.totalorder %s189, %s190
      %p202 = scmp.eq.s32.totalorder %s33, 1
      %p203 = por %p201, %p202
      %p205 = scmp.ne.s32.totalorder %s190, %s204
      %p206 = scmp.eq.s32.totalorder %s33, 0
      %p207 = por %p205, %p206
      %s209 = sadd.s32 %s208, 1
      %p212 = scmp.eq.s32.totalorder %s27, 1
      %p213 = scmp.ne.s32.totalorder %s208, %s210
      %p214 = scmp.eq.s32.totalorder %s27, 0
      %p215 = por %p213, %p214
      %p216 = scmp.ne.s32.totalorder %s208, %s210
      %p217 = scmp.eq.s32.totalorder %s32, 1
      %p218 = por %p216, %p217
      %p219 = scmp.ne.s32.totalorder %s210, %s211
      %p220 = scmp.eq.s32.totalorder %s32, 0
      %p221 = por %p219, %p220
      %p222 = scmp.ne.s32.totalorder %s210, %s211
      %p223 = scmp.eq.s32.totalorder %s33, 1
      %p224 = por %p222, %p223
      %p226 = scmp.ne.s32.totalorder %s211, %s225
      %p227 = scmp.eq.s32.totalorder %s33, 0
      %p228 = por %p226, %p227
      %s230 = sadd.s32 %s229, 1
      %p233 = scmp.eq.s32.totalorder %s27, 1
      %p234 = scmp.ne.s32.totalorder %s229, %s231
      %p235 = scmp.eq.s32.totalorder %s27, 0
      %p236 = por %p234, %p235
      %p237 = scmp.ne.s32.totalorder %s229, %s231
      %p238 = scmp.eq.s32.totalorder %s32, 1
      %p239 = por %p237, %p238
      %p240 = scmp.ne.s32.totalorder %s231, %s232
      %p241 = scmp.eq.s32.totalorder %s32, 0
      %p242 = por %p240, %p241
      %p243 = scmp.ne.s32.totalorder %s231, %s232
      %p244 = scmp.eq.s32.totalorder %s33, 1
      %p245 = por %p243, %p244
      %p247 = scmp.ne.s32.totalorder %s232, %s246
      %p248 = scmp.eq.s32.totalorder %s33, 0
      %p249 = por %p247, %p248
      %s251 = sadd.s32 %s250, 1
      %p254 = scmp.eq.s32.totalorder %s27, 1
      %p255 = scmp.ne.s32.totalorder %s250, %s252
      %p256 = scmp.eq.s32.totalorder %s27, 0
      %p257 = por %p255, %p256
      %p258 = scmp.ne.s32.totalorder %s250, %s252
      %p259 = scmp.eq.s32.totalorder %s32, 1
      %p260 = por %p258, %p259
      %p261 = scmp.ne.s32.totalorder %s252, %s253
      %p262 = scmp.eq.s32.totalorder %s32, 0
      %p263 = por %p261, %p262
      %p264 = scmp.ne.s32.totalorder %s252, %s253
      %p265 = scmp.eq.s32.totalorder %s33, 1
      %p266 = por %p264, %p265
      %p268 = scmp.ne.s32.totalorder %s253, %s267
      %p269 = scmp.eq.s32.totalorder %s33, 0
      %p270 = por %p268, %p269
      %s272 = sadd.s32 %s271, 1
      %p275 = scmp.eq.s32.totalorder %s27, 1
      %p276 = scmp.ne.s32.totalorder %s271, %s273
      %p277 = scmp.eq.s32.totalorder %s27, 0
      %p278 = por %p276, %p277
      %p279 = scmp.ne.s32.totalorder %s271, %s273
      %p280 = scmp.eq.s32.totalorder %s32, 1
      %p281 = por %p279, %p280
      %p282 = scmp.ne.s32.totalorder %s273, %s274
      %p283 = scmp.eq.s32.totalorder %s32, 0
      %p284 = por %p282, %p283
      %p285 = scmp.ne.s32.totalorder %s273, %s274
      %p286 = scmp.eq.s32.totalorder %s33, 1
      %p287 = por %p285, %p286
      %p289 = scmp.ne.s32.totalorder %s274, %s288
      %p290 = scmp.eq.s32.totalorder %s33, 0
      %p291 = por %p289, %p290
      %s293 = sadd.s32 %s292, 1
      %p296 = scmp.eq.s32.totalorder %s27, 1
      %p297 = scmp.ne.s32.totalorder %s292, %s294
      %p298 = scmp.eq.s32.totalorder %s27, 0
      %p299 = por %p297, %p298
      %p300 = scmp.ne.s32.totalorder %s292, %s294
      %p301 = scmp.eq.s32.totalorder %s32, 1
      %p302 = por %p300, %p301
      %p303 = scmp.ne.s32.totalorder %s294, %s295
      %p304 = scmp.eq.s32.totalorder %s32, 0
      %p305 = por %p303, %p304
      %p306 = scmp.ne.s32.totalorder %s294, %s295
      %p307 = scmp.eq.s32.totalorder %s33, 1
      %p308 = por %p306, %p307
      %p310 = scmp.ne.s32.totalorder %s295, %s309
      %p311 = scmp.eq.s32.totalorder %s33, 0
      %p312 = por %p310, %p311
      %s313 = ssub.s32 %s27, %s34
      %p314 = scmp.eq.s32.totalorder %s313, 0
      %s316 = sadd.s32 %s315, 1
      %s317 = scalar_select %p314, %s315, %s316
      %p320 = pneg %p314
      %p321 = scmp.eq.s32.totalorder %s27, 1
      %p322 = por %p320, %p321
      %p323 = scmp.ne.s32.totalorder %s315, %s318
      %p324 = scmp.eq.s32.totalorder %s27, 0
      %p325 = por %p323, %p324
      %p326 = scmp.ne.s32.totalorder %s315, %s318
      %p327 = scmp.eq.s32.totalorder %s32, 1
      %p328 = por %p326, %p327
      %p329 = scmp.ne.s32.totalorder %s318, %s319
      %p330 = scmp.eq.s32.totalorder %s32, 0
      %p331 = por %p329, %p330
      %p332 = scmp.ne.s32.totalorder %s318, %s319
      %p333 = scmp.eq.s32.totalorder %s33, 1
      %p334 = por %p332, %p333
      %p336 = scmp.ne.s32.totalorder %s319, %s335
      %p337 = scmp.eq.s32.totalorder %s33, 0
      %p338 = por %p336, %p337
      %p339 = scmp.le.s32.totalorder 1, %s27
      %p340 = scmp.lt.s32.totalorder %s27, 3
      %p341 = pnand %p339, %p340
      %p342 = pneg %p341
      // Predicated region
      $region9: #{tpu_custom_call.1} parent=5 // pred_check
        _
      $region10: #{tpu_custom_call.1} parent=5 // pred_check_branch
        %344 = sbr.rel (%p341) target = $region12
      $region11: #{tpu_custom_call.1} parent=5 // pred_region
        %s345 = ssub.s32 %s27, 1
        // Predicated region
        $region13: #{tpu_custom_call.1} parent=11 // pred_check
          %p346 = pneg %p74
        $region14: #{tpu_custom_call.1} parent=11 // pred_check_branch
          %348 = sbr.rel (%p346) target = $region16
        $region15: #{tpu_custom_call.1} parent=11 // pred_region
          %s350 = ssub.s32 384, 384
          %351 = vsyncadd [#allocation6], %s350
          %s352 = sshll.u32 [#allocation5], 4
          %s353 = int_to_ptr.vmem [resolvable:$true] %s352
          %358 = dma.hbm_to_vmem [thread:$0]  %s1, 384, %s353, [#allocation6], 128, 128, 8
        $region16: #{tpu_custom_call.1} parent=11 // pred_fallthru
          _
        // Predicated region
        $region17: #{tpu_custom_call.1} parent=11 // pred_check
          %p359 = pneg %p95
        $region18: #{tpu_custom_call.1} parent=11 // pred_check_branch
          %361 = sbr.rel (%p359) target = $region20
        $region19: #{tpu_custom_call.1} parent=11 // pred_region
          _
        $region20: #{tpu_custom_call.1} parent=11 // pred_fallthru
          _
        // Predicated region
        $region21: #{tpu_custom_call.1} parent=11 // pred_check
          %p362 = pneg %p116
        $region22: #{tpu_custom_call.1} parent=11 // pred_check_branch
          %364 = sbr.rel (%p362) target = $region24
        $region23: #{tpu_custom_call.1} parent=11 // pred_region
          _
        $region24: #{tpu_custom_call.1} parent=11 // pred_fallthru
          _
        // Predicated region
        $region25: #{tpu_custom_call.1} parent=11 // pred_check
          %p365 = pneg %p137
        $region26: #{tpu_custom_call.1} parent=11 // pred_check_branch
          %367 = sbr.rel (%p365) target = $region28
        $region27: #{tpu_custom_call.1} parent=11 // pred_region
          _
        $region28: #{tpu_custom_call.1} parent=11 // pred_fallthru
          _
        // Predicated region
        $region29: #{tpu_custom_call.1} parent=11 // pred_check
          %p368 = pneg %p158
        $region30: #{tpu_custom_call.1} parent=11 // pred_check_branch
          %370 = sbr.rel (%p368) target = $region32
        $region31: #{tpu_custom_call.1} parent=11 // pred_region
          %s372 = ssub.s32 512, 512
          %373 = vsyncadd [#allocation6], %s372
          %s374 = sshll.u32 [#allocation7], 4
          %s375 = int_to_ptr.vmem [resolvable:$true] %s374
          %380 = dma.hbm_to_vmem [thread:$0]  %s5, 512, %s375, [#allocation6], 128, 128, 8
        $region32: #{tpu_custom_call.1} parent=11 // pred_fallthru
          _
        // Predicated region
        $region33: #{tpu_custom_call.1} parent=11 // pred_check
          %p381 = pneg %p179
        $region34: #{tpu_custom_call.1} parent=11 // pred_check_branch
          %383 = sbr.rel (%p381) target = $region36
        $region35: #{tpu_custom_call.1} parent=11 // pred_region
          _
        $region36: #{tpu_custom_call.1} parent=11 // pred_fallthru
          _
        // Predicated region
        $region37: #{tpu_custom_call.1} parent=11 // pred_check
          %p384 = pneg %p200
        $region38: #{tpu_custom_call.1} parent=11 // pred_check_branch
          %386 = sbr.rel (%p384) target = $region40
        $region39: #{tpu_custom_call.1} parent=11 // pred_region
          %s388 = ssub.s32 512, 512
          %389 = vsyncadd [#allocation9], %s388
          %s390 = sshll.u32 [#allocation8], 4
          %s391 = int_to_ptr.vmem [resolvable:$true] %s390
          %396 = dma.hbm_to_vmem [thread:$0]  %s7, 512, %s391, [#allocation9], 128, 128, 8
        $region40: #{tpu_custom_call.1} parent=11 // pred_fallthru
          _
        // Predicated region
        $region41: #{tpu_custom_call.1} parent=11 // pred_check
          %p397 = pneg %p221
        $region42: #{tpu_custom_call.1} parent=11 // pred_check_branch
          %399 = sbr.rel (%p397) target = $region44
        $region43: #{tpu_custom_call.1} parent=11 // pred_region
          _
        $region44: #{tpu_custom_call.1} parent=11 // pred_fallthru
          _
        // Predicated region
        $region45: #{tpu_custom_call.1} parent=11 // pred_check
          %p400 = pneg %p242
        $region46: #{tpu_custom_call.1} parent=11 // pred_check_branch
          %402 = sbr.rel (%p400) target = $region48
        $region47: #{tpu_custom_call.1} parent=11 // pred_region
          %s404 = ssub.s32 512, 512
          %405 = vsyncadd [#allocation9], %s404
          %s406 = sshll.u32 [#allocation10], 4
          %s407 = int_to_ptr.vmem [resolvable:$true] %s406
          %412 = dma.hbm_to_vmem [thread:$0]  %s9, 512, %s407, [#allocation9], 128, 128, 8
        $region48: #{tpu_custom_call.1} parent=11 // pred_fallthru
          _
        // Predicated region
        $region49: #{tpu_custom_call.1} parent=11 // pred_check
          %p413 = pneg %p263
        $region50: #{tpu_custom_call.1} parent=11 // pred_check_branch
          %415 = sbr.rel (%p413) target = $region52
        $region51: #{tpu_custom_call.1} parent=11 // pred_region
          _
        $region52: #{tpu_custom_call.1} parent=11 // pred_fallthru
          _
        // Predicated region
        $region53: #{tpu_custom_call.1} parent=11 // pred_check
          %p416 = pneg %p284
        $region54: #{tpu_custom_call.1} parent=11 // pred_check_branch
          %418 = sbr.rel (%p416) target = $region56
        $region55: #{tpu_custom_call.1} parent=11 // pred_region
          _
        $region56: #{tpu_custom_call.1} parent=11 // pred_fallthru
          _
        // Predicated region
        $region57: #{tpu_custom_call.1} parent=11 // pred_check
          %p419 = pneg %p305
        $region58: #{tpu_custom_call.1} parent=11 // pred_check_branch
          %421 = sbr.rel (%p419) target = $region60
        $region59: #{tpu_custom_call.1} parent=11 // pred_region
          _
        $region60: #{tpu_custom_call.1} parent=11 // pred_fallthru
          _
      $region12: #{tpu_custom_call.1} parent=5 // pred_fallthru
        _
      %p422 = scmp.lt.s32.totalorder %s27, 2
      // Predicated region
      $region61: #{tpu_custom_call.1} parent=5 // pred_check
        %p423 = pneg %p422
      $region62: #{tpu_custom_call.1} parent=5 // pred_check_branch
        %425 = sbr.rel (%p423) target = $region64
      $region63: #{tpu_custom_call.1} parent=5 // pred_region
        // Predicated region
        $region65: #{tpu_custom_call.1} parent=63 // pred_check
          %p426 = pneg %p47
        $region66: #{tpu_custom_call.1} parent=63 // pred_check_branch
          %428 = sbr.rel (%p426) target = $region68
        $region67: #{tpu_custom_call.1} parent=63 // pred_region
          %s429 = sand.u32 %s37, 1
          %s430 = scalar_lea.sflag [#allocation3], %s429
          %s431 = sand.u32 %s37, 1
          %s432 = smul.addr %s431, 16
          %s433 = scalar_lea.vmem [#allocation2], %s432
          %s434 = smul.u32 2, %s27
          %s435 = ssub.s32 3, %s434
          %p436 = scmp.lt.s32.totalorder %s435, 2
          %s437 = scalar_select %p436, %s435, 2
          %s438 = smul.u32 128, %s437
          %s440 = ssub.s32 256, %s438
          %441 = vsyncadd %s430, %s440
          %p442 = scmp.ne.s32.totalorder 0, %s438
          %s443 = smul.addr %s434, 128
          %s444 = scalar_lea.hbm %s0, %s443
          %s445 = smul.u32 8, %s437
          %s446 = sshll.u32 %s433, 4
          %s447 = int_to_ptr.vmem [resolvable:$true] %s446
          %s448 = sshll.u32 %s445, 4
          %452 = dma.hbm_to_vmem [thread:$0]  (%p442), %s444, %s448, %s447, %s430, 128, 128, 8
        $region68: #{tpu_custom_call.1} parent=63 // pred_fallthru
          _
      $region64: #{tpu_custom_call.1} parent=5 // pred_fallthru
        _
      %p453 = scmp.le.s32.totalorder 1, %s27
      %p454 = scmp.lt.s32.totalorder %s27, 3
      %p455 = pnand %p453, %p454
      %p456 = pneg %p455
      // Predicated region
      $region69: #{tpu_custom_call.1} parent=5 // pred_check
        _
      $region70: #{tpu_custom_call.1} parent=5 // pred_check_branch
        %458 = sbr.rel (%p455) target = $region72
      $region71: #{tpu_custom_call.1} parent=5 // pred_region
        %s459 = ssub.s32 %s27, 1
        %s460 = sand.u32 %s40, 1
        %s461 = scalar_lea.sflag [#allocation3], %s460
        %s462 = sand.u32 %s40, 1
        %s463 = smul.addr %s462, 16
        %s464 = scalar_lea.vmem [#allocation2], %s463
        // Predicated region
        $region73: #{tpu_custom_call.1} parent=71 // pred_check
          %p465 = pneg %p53
        $region74: #{tpu_custom_call.1} parent=71 // pred_check_branch
          %467 = sbr.rel (%p465) target = $region76
        $region75: #{tpu_custom_call.1} parent=71 // pred_region
          %468 = dma.done %s461, 256
        $region76: #{tpu_custom_call.1} parent=71 // pred_fallthru
          _
        // Predicated region
        $region77: #{tpu_custom_call.1} parent=71 // pred_check
          %p469 = pneg %p74
        $region78: #{tpu_custom_call.1} parent=71 // pred_check_branch
          %471 = sbr.rel (%p469) target = $region80
        $region79: #{tpu_custom_call.1} parent=71 // pred_region
          %472 = dma.done [#allocation6], 384
        $region80: #{tpu_custom_call.1} parent=71 // pred_fallthru
          _
        // Predicated region
        $region81: #{tpu_custom_call.1} parent=71 // pred_check
          %p473 = pneg %p158
        $region82: #{tpu_custom_call.1} parent=71 // pred_check_branch
          %475 = sbr.rel (%p473) target = $region84
        $region83: #{tpu_custom_call.1} parent=71 // pred_region
          %476 = dma.done [#allocation6], 512
        $region84: #{tpu_custom_call.1} parent=71 // pred_fallthru
          _
        // Predicated region
        $region85: #{tpu_custom_call.1} parent=71 // pred_check
          %p477 = pneg %p200
        $region86: #{tpu_custom_call.1} parent=71 // pred_check_branch
          %479 = sbr.rel (%p477) target = $region88
        $region87: #{tpu_custom_call.1} parent=71 // pred_region
          %480 = dma.done [#allocation9], 512
        $region88: #{tpu_custom_call.1} parent=71 // pred_fallthru
          _
        // Predicated region
        $region89: #{tpu_custom_call.1} parent=71 // pred_check
          %p481 = pneg %p242
        $region90: #{tpu_custom_call.1} parent=71 // pred_check_branch
          %483 = sbr.rel (%p481) target = $region92
        $region91: #{tpu_custom_call.1} parent=71 // pred_region
          %484 = dma.done [#allocation9], 512
        $region92: #{tpu_custom_call.1} parent=71 // pred_fallthru
          _
        %s485 = sand.u32 %s40, 1
        %s486 = scalar_lea.sflag [#allocation3], %s485
        %s487 = sand.u32 %s40, 1
        %s488 = smul.addr %s487, 16
        %s489 = scalar_lea.vmem [#allocation2], %s488
        %p490 = pneg %p53
        %p491 = pneg %p50
        %p492 = pneg %p74
        %p493 = pneg %p71
        %p494 = pneg %p95
        %p495 = pneg %p92
        %p496 = pneg %p116
        %p497 = pneg %p113
        %p498 = pneg %p137
        %p499 = pneg %p134
        %p500 = pneg %p158
        %p501 = pneg %p155
        %p502 = pneg %p179
        %p503 = pneg %p176
        %p504 = pneg %p200
        %p505 = pneg %p197
        %p506 = pneg %p221
        %p507 = pneg %p218
        %p508 = pneg %p242
        %p509 = pneg %p239
        %p510 = pneg %p263
        %p511 = pneg %p260
        %p512 = pneg %p284
        %p513 = pneg %p281
        %p514 = pneg %p305
        %p515 = pneg %p302
        %p516 = pneg %p331
        %p517 = pneg %p328
        %s518 = sand.u32 %s318, 1
        %s519 = scalar_lea.sflag [#allocation4], %s518
        %s520 = sand.u32 %s318, 1
        %s521 = smul.addr %s520, 16
        %s522 = scalar_lea.vmem [#allocation11], %s521
        %s523 = smul.u32 2, %s32
        %s524 = ssub.s32 3, %s523
        %p525 = scmp.lt.s32.totalorder %s524, 2
        %s526 = scalar_select %p525, %s524, 2
        %s527 = smul.u32 128, %s526
        %s528 = smul.u32 2, %s32
        %s529 = ssub.s32 3, %s528
        %p530 = scmp.lt.s32.totalorder %s529, 2
        %s531 = scalar_select %p530, %s529, 2
        %s532 = smul.u32 128, %s531
        %v533 = vld [vmem:[%s464] sm:$0xff]
        %v534 = vld [vmem:[%s464 + $0x8] sm:$0xff]
        %v535 = vld [vmem:[#allocation5] sm:$0xff]
        %v536 = vld [vmem:[#allocation5 + $0x8] sm:$0xff]
        %v537 = vld [vmem:[#allocation5 + $0x10] sm:$0xff]
        %v538 = vld [vmem:[%s2] sm:$0x1]
        %v540 = vlaneseq
        %v541 = vshrl.u32 %v540, 7
        %v542 = vsub.s32 0, %v541
        %v543 = vrot.slane %v538, %v542
        %vm545 = vcmask 195584
        %v547 = vsel %vm545, %v533, 0
        %v550 = vsel %vm545, %v534, 0
        %552 = vmatprep.subr.mxu0 0.0
        %553 = vmatpush1.msra.mxu0 0.0
        %554 = vmatprep.subr.mxu0 0.0
        %555 = vmatpush1.msra.mxu0 0.0
        %556 = vmatprep.subr.mxu0 0.0
        %557 = vmatpush1.msra.mxu0 0.0
        %558 = vmatprep.subr.mxu0 0.0
        %559 = vmatpush1.msra.mxu0 0.0
        %560 = vmatprep.subr.mxu0 0.0
        %561 = vmatpush1.msra.mxu0 0.0
        %562 = vmatprep.subr.mxu0 0.0
        %563 = vmatpush1.msra.mxu0 0.0
        %564 = vmatprep.subr.mxu0 0.0
        %565 = vmatpush1.msra.mxu0 0.0
        %566 = vmatprep.subr.mxu0 0.0
        %567 = vmatpush1.msra.mxu0 0.0
        %568 = vmatprep.subr.mxu0 0.0
        %569 = vmatpush1.msra.mxu0 0.0
        %570 = vmatprep.subr.mxu0 0.0
        %571 = vmatpush1.msra.mxu0 0.0
        %572 = vmatprep.subr.mxu0 0.0
        %573 = vmatpush1.msra.mxu0 0.0
        %574 = vmatprep.subr.mxu0 0.0
        %575 = vmatpush1.msra.mxu0 0.0
        %576 = vmatprep.subr.mxu0 0.0
        %577 = vmatpush1.msra.mxu0 0.0
        %578 = vmatprep.subr.mxu0 0.0
        %579 = vmatpush1.msra.mxu0 %v537
        %580 = vmatprep.subr.mxu0 0.0
        %581 = vmatpush1.msra.mxu0 %v536
        %582 = vmatprep.subr.mxu0 0.0
        %583 = vmatpush1.msra.mxu0 %v535
        %584 = vmatprep.subr.mxu0 0.0
        %585 = vmatpush2.msra.mxu0 0.0
        %586 = vmatprep.subr.mxu0 0.0
        %587 = vmatpush2.msra.mxu0 0.0
        %588 = vmatprep.subr.mxu0 0.0
        %589 = vmatpush2.msra.mxu0 0.0
        %590 = vmatprep.subr.mxu0 0.0
        %591 = vmatpush2.msra.mxu0 0.0
        %592 = vmatprep.subr.mxu0 0.0
        %593 = vmatpush2.msra.mxu0 0.0
        %594 = vmatprep.subr.mxu0 0.0
        %595 = vmatpush2.msra.mxu0 0.0
        %596 = vmatprep.subr.mxu0 0.0
        %597 = vmatpush2.msra.mxu0 0.0
        %598 = vmatprep.subr.mxu0 0.0
        %599 = vmatpush2.msra.mxu0 0.0
        %600 = vmatprep.subr.mxu0 0.0
        %601 = vmatpush2.msra.mxu0 0.0
        %602 = vmatprep.subr.mxu0 0.0
        %603 = vmatpush2.msra.mxu0 0.0
        %604 = vmatprep.subr.mxu0 0.0
        %605 = vmatpush2.msra.mxu0 0.0
        %606 = vmatprep.subr.mxu0 0.0
        %607 = vmatpush2.msra.mxu0 0.0
        %608 = vmatprep.subr.mxu0 0.0
        %609 = vmatpush2.msra.mxu0 0.0
        %610 = vmatprep.subr.mxu0 0.0
        %611 = vmatpush2.msra.mxu0 0.0
        %612 = vmatprep.subr.mxu0 0.0
        %613 = vmatpush2.msra.mxu0 0.0
        %614 = vmatprep.subr.mxu0 0.0
        %615 = vmatpush2.msra.mxu0 0.0
        %616 = vmatprep.mubr.f32.mxu0 0.0
        %617 = vmatmul.mubr.f32.gmra.mxu0 %v547
        %v618 = vpop.f32.mrf.mxu0
        %v619 = vadd.f32 %v543, %v618
        %v620 = vpop.f32.mrf.mxu0
        %621 = vmatprep.mubr.f32.mxu0 0.0
        %622 = vmatmul.mubr.f32.gmra.mxu0 %v550
        %v623 = vpop.f32.mrf.mxu0
        %v624 = vadd.f32 %v543, %v623
        %v625 = vpop.f32.mrf.mxu0
        %626 = vdwg.mxu0
        %v627 = vmax.f32 %v619, 0.0
        %v628 = vmax.f32 %v624, 0.0
        %v629 = vld [vmem:[%s3] sm:$0xff]
        %v630 = vld [vmem:[%s3 + $0x8] sm:$0xff]
        %v631 = vld [vmem:[%s3 + $0x10] sm:$0xff]
        %v632 = vld [vmem:[%s3 + $0x18] sm:$0xff]
        %v633 = vld [vmem:[%s4] sm:$0x1]
        %v635 = vlaneseq
        %v636 = vshrl.u32 %v635, 7
        %v637 = vsub.s32 0, %v636
        %v638 = vrot.slane %v633, %v637
        %vm640 = vcmask 261120
        %v642 = vsel %vm640, %v627, 0
        %v645 = vsel %vm640, %v628, 0
        %647 = vmatprep.subr.mxu0 0.0
        %648 = vmatpush1.msra.mxu0 0.0
        %649 = vmatprep.subr.mxu0 0.0
        %650 = vmatpush1.msra.mxu0 0.0
        %651 = vmatprep.subr.mxu0 0.0
        %652 = vmatpush1.msra.mxu0 0.0
        %653 = vmatprep.subr.mxu0 0.0
        %654 = vmatpush1.msra.mxu0 0.0
        %655 = vmatprep.subr.mxu0 0.0
        %656 = vmatpush1.msra.mxu0 0.0
        %657 = vmatprep.subr.mxu0 0.0
        %658 = vmatpush1.msra.mxu0 0.0
        %659 = vmatprep.subr.mxu0 0.0
        %660 = vmatpush1.msra.mxu0 0.0
        %661 = vmatprep.subr.mxu0 0.0
        %662 = vmatpush1.msra.mxu0 0.0
        %663 = vmatprep.subr.mxu0 0.0
        %664 = vmatpush1.msra.mxu0 0.0
        %665 = vmatprep.subr.mxu0 0.0
        %666 = vmatpush1.msra.mxu0 0.0
        %667 = vmatprep.subr.mxu0 0.0
        %668 = vmatpush1.msra.mxu0 0.0
        %669 = vmatprep.subr.mxu0 0.0
        %670 = vmatpush1.msra.mxu0 0.0
        %671 = vmatprep.subr.mxu0 0.0
        %672 = vmatpush1.msra.mxu0 %v632
        %673 = vmatprep.subr.mxu0 0.0
        %674 = vmatpush1.msra.mxu0 %v631
        %675 = vmatprep.subr.mxu0 0.0
        %676 = vmatpush1.msra.mxu0 %v630
        %677 = vmatprep.subr.mxu0 0.0
        %678 = vmatpush1.msra.mxu0 %v629
        %679 = vmatprep.subr.mxu0 0.0
        %680 = vmatpush2.msra.mxu0 0.0
        %681 = vmatprep.subr.mxu0 0.0
        %682 = vmatpush2.msra.mxu0 0.0
        %683 = vmatprep.subr.mxu0 0.0
        %684 = vmatpush2.msra.mxu0 0.0
        %685 = vmatprep.subr.mxu0 0.0
        %686 = vmatpush2.msra.mxu0 0.0
        %687 = vmatprep.subr.mxu0 0.0
        %688 = vmatpush2.msra.mxu0 0.0
        %689 = vmatprep.subr.mxu0 0.0
        %690 = vmatpush2.msra.mxu0 0.0
        %691 = vmatprep.subr.mxu0 0.0
        %692 = vmatpush2.msra.mxu0 0.0
        %693 = vmatprep.subr.mxu0 0.0
        %694 = vmatpush2.msra.mxu0 0.0
        %695 = vmatprep.subr.mxu0 0.0
        %696 = vmatpush2.msra.mxu0 0.0
        %697 = vmatprep.subr.mxu0 0.0
        %698 = vmatpush2.msra.mxu0 0.0
        %699 = vmatprep.subr.mxu0 0.0
        %700 = vmatpush2.msra.mxu0 0.0
        %701 = vmatprep.subr.mxu0 0.0
        %702 = vmatpush2.msra.mxu0 0.0
        %703 = vmatprep.subr.mxu0 0.0
        %704 = vmatpush2.msra.mxu0 0.0
        %705 = vmatprep.subr.mxu0 0.0
        %706 = vmatpush2.msra.mxu0 0.0
        %707 = vmatprep.subr.mxu0 0.0
        %708 = vmatpush2.msra.mxu0 0.0
        %709 = vmatprep.subr.mxu0 0.0
        %710 = vmatpush2.msra.mxu0 0.0
        %711 = vmatprep.mubr.f32.mxu0 0.0
        %712 = vmatmul.mubr.f32.gmra.mxu0 %v642
        %v713 = vpop.f32.mrf.mxu0
        %v714 = vadd.f32 %v638, %v713
        %v715 = vpop.f32.mrf.mxu0
        %716 = vmatprep.mubr.f32.mxu0 0.0
        %717 = vmatmul.mubr.f32.gmra.mxu0 %v645
        %v718 = vpop.f32.mrf.mxu0
        %v719 = vadd.f32 %v638, %v718
        %v720 = vpop.f32.mrf.mxu0
        %721 = vdwg.mxu0
        %v722 = vmax.f32 %v714, 0.0
        %v723 = vmax.f32 %v719, 0.0
        %v724 = vld [vmem:[#allocation7] sm:$0xff]
        %v725 = vld [vmem:[#allocation7 + $0x8] sm:$0xff]
        %v726 = vld [vmem:[#allocation7 + $0x10] sm:$0xff]
        %v727 = vld [vmem:[#allocation7 + $0x18] sm:$0xff]
        %v728 = vld [vmem:[%s6] sm:$0x1]
        %v730 = vlaneseq
        %v731 = vshrl.u32 %v730, 7
        %v732 = vsub.s32 0, %v731
        %v733 = vrot.slane %v728, %v732
        %v736 = vsel %vm640, %v722, 0
        %v739 = vsel %vm640, %v723, 0
        %741 = vmatprep.subr.mxu0 0.0
        %742 = vmatpush1.msra.mxu0 0.0
        %743 = vmatprep.subr.mxu0 0.0
        %744 = vmatpush1.msra.mxu0 0.0
        %745 = vmatprep.subr.mxu0 0.0
        %746 = vmatpush1.msra.mxu0 0.0
        %747 = vmatprep.subr.mxu0 0.0
        %748 = vmatpush1.msra.mxu0 0.0
        %749 = vmatprep.subr.mxu0 0.0
        %750 = vmatpush1.msra.mxu0 0.0
        %751 = vmatprep.subr.mxu0 0.0
        %752 = vmatpush1.msra.mxu0 0.0
        %753 = vmatprep.subr.mxu0 0.0
        %754 = vmatpush1.msra.mxu0 0.0
        %755 = vmatprep.subr.mxu0 0.0
        %756 = vmatpush1.msra.mxu0 0.0
        %757 = vmatprep.subr.mxu0 0.0
        %758 = vmatpush1.msra.mxu0 0.0
        %759 = vmatprep.subr.mxu0 0.0
        %760 = vmatpush1.msra.mxu0 0.0
        %761 = vmatprep.subr.mxu0 0.0
        %762 = vmatpush1.msra.mxu0 0.0
        %763 = vmatprep.subr.mxu0 0.0
        %764 = vmatpush1.msra.mxu0 0.0
        %765 = vmatprep.subr.mxu0 0.0
        %766 = vmatpush1.msra.mxu0 %v727
        %767 = vmatprep.subr.mxu0 0.0
        %768 = vmatpush1.msra.mxu0 %v726
        %769 = vmatprep.subr.mxu0 0.0
        %770 = vmatpush1.msra.mxu0 %v725
        %771 = vmatprep.subr.mxu0 0.0
        %772 = vmatpush1.msra.mxu0 %v724
        %773 = vmatprep.subr.mxu0 0.0
        %774 = vmatpush2.msra.mxu0 0.0
        %775 = vmatprep.subr.mxu0 0.0
        %776 = vmatpush2.msra.mxu0 0.0
        %777 = vmatprep.subr.mxu0 0.0
        %778 = vmatpush2.msra.mxu0 0.0
        %779 = vmatprep.subr.mxu0 0.0
        %780 = vmatpush2.msra.mxu0 0.0
        %781 = vmatprep.subr.mxu0 0.0
        %782 = vmatpush2.msra.mxu0 0.0
        %783 = vmatprep.subr.mxu0 0.0
        %784 = vmatpush2.msra.mxu0 0.0
        %785 = vmatprep.subr.mxu0 0.0
        %786 = vmatpush2.msra.mxu0 0.0
        %787 = vmatprep.subr.mxu0 0.0
        %788 = vmatpush2.msra.mxu0 0.0
        %789 = vmatprep.subr.mxu0 0.0
        %790 = vmatpush2.msra.mxu0 0.0
        %791 = vmatprep.subr.mxu0 0.0
        %792 = vmatpush2.msra.mxu0 0.0
        %793 = vmatprep.subr.mxu0 0.0
        %794 = vmatpush2.msra.mxu0 0.0
        %795 = vmatprep.subr.mxu0 0.0
        %796 = vmatpush2.msra.mxu0 0.0
        %797 = vmatprep.subr.mxu0 0.0
        %798 = vmatpush2.msra.mxu0 0.0
        %799 = vmatprep.subr.mxu0 0.0
        %800 = vmatpush2.msra.mxu0 0.0
        %801 = vmatprep.subr.mxu0 0.0
        %802 = vmatpush2.msra.mxu0 0.0
        %803 = vmatprep.subr.mxu0 0.0
        %804 = vmatpush2.msra.mxu0 0.0
        %805 = vmatprep.mubr.f32.mxu0 0.0
        %806 = vmatmul.mubr.f32.gmra.mxu0 %v736
        %v807 = vpop.f32.mrf.mxu0
        %v808 = vadd.f32 %v733, %v807
        %v809 = vpop.f32.mrf.mxu0
        %810 = vmatprep.mubr.f32.mxu0 0.0
        %811 = vmatmul.mubr.f32.gmra.mxu0 %v739
        %v812 = vpop.f32.mrf.mxu0
        %v813 = vadd.f32 %v733, %v812
        %v814 = vpop.f32.mrf.mxu0
        %815 = vdwg.mxu0
        %v816 = vmax.f32 %v808, -4.0
        %v817 = vmax.f32 %v813, -4.0
        %v818 = vmin.f32 %v816, 15.0
        %v819 = vmin.f32 %v817, 15.0
        %v820 = vmul.f32 %v818, 1.442695
        %v821 = vpow.pop %v820
        %v822 = vmul.f32 %v819, 1.442695
        %v823 = vpow.pop %v822
        %824 = vrot.lane.b32.xlu0 %v533, 120
        %v825 = vpop.permute.xlu0 %824
        %826 = vrot.lane.b32.xlu0 %v534, 120
        %v827 = vpop.permute.xlu0 %826
        %v830 = vmul.f32 %v821, %v825
        %v831 = vmul.f32 %v823, %v827
        %834 = vrot.lane.b32.xlu0 %v830, 112
        %v835 = vpop.permute.xlu0 %834
        %836 = vrot.lane.b32.xlu0 %v831, 112
        %v837 = vpop.permute.xlu0 %836
        %v840 = vadd.f32 %v808, %v835
        %v841 = vadd.f32 %v813, %v837
        %844 = vrot.lane.b32.xlu0 %v840, 16
        %v845 = vpop.permute.xlu0 %844
        %846 = vrot.lane.b32.xlu0 %v841, 16
        %v847 = vpop.permute.xlu0 %846
        %vm850 = vcmask 130048
        %v851 = vsel %vm850, %v533, %v845
        %v852 = vsel %vm850, %v534, %v847
        %v853 = vld [vmem:[#allocation8] sm:$0xff]
        %v854 = vld [vmem:[#allocation8 + $0x8] sm:$0xff]
        %v855 = vld [vmem:[#allocation8 + $0x10] sm:$0xff]
        %v856 = vld [vmem:[#allocation8 + $0x18] sm:$0xff]
        %v857 = vld [vmem:[%s8] sm:$0x1]
        %v859 = vlaneseq
        %v860 = vshrl.u32 %v859, 7
        %v861 = vsub.s32 0, %v860
        %v862 = vrot.slane %v857, %v861
        %v865 = vsel %vm640, %v851, 0
        %v868 = vsel %vm640, %v852, 0
        %870 = vmatprep.subr.mxu0 0.0
        %871 = vmatpush1.msra.mxu0 0.0
        %872 = vmatprep.subr.mxu0 0.0
        %873 = vmatpush1.msra.mxu0 0.0
        %874 = vmatprep.subr.mxu0 0.0
        %875 = vmatpush1.msra.mxu0 0.0
        %876 = vmatprep.subr.mxu0 0.0
        %877 = vmatpush1.msra.mxu0 0.0
        %878 = vmatprep.subr.mxu0 0.0
        %879 = vmatpush1.msra.mxu0 0.0
        %880 = vmatprep.subr.mxu0 0.0
        %881 = vmatpush1.msra.mxu0 0.0
        %882 = vmatprep.subr.mxu0 0.0
        %883 = vmatpush1.msra.mxu0 0.0
        %884 = vmatprep.subr.mxu0 0.0
        %885 = vmatpush1.msra.mxu0 0.0
        %886 = vmatprep.subr.mxu0 0.0
        %887 = vmatpush1.msra.mxu0 0.0
        %888 = vmatprep.subr.mxu0 0.0
        %889 = vmatpush1.msra.mxu0 0.0
        %890 = vmatprep.subr.mxu0 0.0
        %891 = vmatpush1.msra.mxu0 0.0
        %892 = vmatprep.subr.mxu0 0.0
        %893 = vmatpush1.msra.mxu0 0.0
        %894 = vmatprep.subr.mxu0 0.0
        %895 = vmatpush1.msra.mxu0 %v856
        %896 = vmatprep.subr.mxu0 0.0
        %897 = vmatpush1.msra.mxu0 %v855
        %898 = vmatprep.subr.mxu0 0.0
        %899 = vmatpush1.msra.mxu0 %v854
        %900 = vmatprep.subr.mxu0 0.0
        %901 = vmatpush1.msra.mxu0 %v853
        %902 = vmatprep.subr.mxu0 0.0
        %903 = vmatpush2.msra.mxu0 0.0
        %904 = vmatprep.subr.mxu0 0.0
        %905 = vmatpush2.msra.mxu0 0.0
        %906 = vmatprep.subr.mxu0 0.0
        %907 = vmatpush2.msra.mxu0 0.0
        %908 = vmatprep.subr.mxu0 0.0
        %909 = vmatpush2.msra.mxu0 0.0
        %910 = vmatprep.subr.mxu0 0.0
        %911 = vmatpush2.msra.mxu0 0.0
        %912 = vmatprep.subr.mxu0 0.0
        %913 = vmatpush2.msra.mxu0 0.0
        %914 = vmatprep.subr.mxu0 0.0
        %915 = vmatpush2.msra.mxu0 0.0
        %916 = vmatprep.subr.mxu0 0.0
        %917 = vmatpush2.msra.mxu0 0.0
        %918 = vmatprep.subr.mxu0 0.0
        %919 = vmatpush2.msra.mxu0 0.0
        %920 = vmatprep.subr.mxu0 0.0
        %921 = vmatpush2.msra.mxu0 0.0
        %922 = vmatprep.subr.mxu0 0.0
        %923 = vmatpush2.msra.mxu0 0.0
        %924 = vmatprep.subr.mxu0 0.0
        %925 = vmatpush2.msra.mxu0 0.0
        %926 = vmatprep.subr.mxu0 0.0
        %927 = vmatpush2.msra.mxu0 0.0
        %928 = vmatprep.subr.mxu0 0.0
        %929 = vmatpush2.msra.mxu0 0.0
        %930 = vmatprep.subr.mxu0 0.0
        %931 = vmatpush2.msra.mxu0 0.0
        %932 = vmatprep.subr.mxu0 0.0
        %933 = vmatpush2.msra.mxu0 0.0
        %934 = vmatprep.mubr.f32.mxu0 0.0
        %935 = vmatmul.mubr.f32.gmra.mxu0 %v865
        %v936 = vpop.f32.mrf.mxu0
        %v937 = vadd.f32 %v862, %v936
        %v938 = vpop.f32.mrf.mxu0
        %939 = vmatprep.mubr.f32.mxu0 0.0
        %940 = vmatmul.mubr.f32.gmra.mxu0 %v868
        %v941 = vpop.f32.mrf.mxu0
        %v942 = vadd.f32 %v862, %v941
        %v943 = vpop.f32.mrf.mxu0
        %944 = vdwg.mxu0
        %v945 = vmax.f32 %v937, 0.0
        %v946 = vmax.f32 %v942, 0.0
        %v947 = vld [vmem:[#allocation10] sm:$0xff]
        %v948 = vld [vmem:[#allocation10 + $0x8] sm:$0xff]
        %v949 = vld [vmem:[#allocation10 + $0x10] sm:$0xff]
        %v950 = vld [vmem:[#allocation10 + $0x18] sm:$0xff]
        %v951 = vld [vmem:[%s10] sm:$0x1]
        %v953 = vlaneseq
        %v954 = vshrl.u32 %v953, 7
        %v955 = vsub.s32 0, %v954
        %v956 = vrot.slane %v951, %v955
        %v959 = vsel %vm640, %v945, 0
        %v962 = vsel %vm640, %v946, 0
        %964 = vmatprep.subr.mxu0 0.0
        %965 = vmatpush1.msra.mxu0 0.0
        %966 = vmatprep.subr.mxu0 0.0
        %967 = vmatpush1.msra.mxu0 0.0
        %968 = vmatprep.subr.mxu0 0.0
        %969 = vmatpush1.msra.mxu0 0.0
        %970 = vmatprep.subr.mxu0 0.0
        %971 = vmatpush1.msra.mxu0 0.0
        %972 = vmatprep.subr.mxu0 0.0
        %973 = vmatpush1.msra.mxu0 0.0
        %974 = vmatprep.subr.mxu0 0.0
        %975 = vmatpush1.msra.mxu0 0.0
        %976 = vmatprep.subr.mxu0 0.0
        %977 = vmatpush1.msra.mxu0 0.0
        %978 = vmatprep.subr.mxu0 0.0
        %979 = vmatpush1.msra.mxu0 0.0
        %980 = vmatprep.subr.mxu0 0.0
        %981 = vmatpush1.msra.mxu0 0.0
        %982 = vmatprep.subr.mxu0 0.0
        %983 = vmatpush1.msra.mxu0 0.0
        %984 = vmatprep.subr.mxu0 0.0
        %985 = vmatpush1.msra.mxu0 0.0
        %986 = vmatprep.subr.mxu0 0.0
        %987 = vmatpush1.msra.mxu0 0.0
        %988 = vmatprep.subr.mxu0 0.0
        %989 = vmatpush1.msra.mxu0 %v950
        %990 = vmatprep.subr.mxu0 0.0
        %991 = vmatpush1.msra.mxu0 %v949
        %992 = vmatprep.subr.mxu0 0.0
        %993 = vmatpush1.msra.mxu0 %v948
        %994 = vmatprep.subr.mxu0 0.0
        %995 = vmatpush1.msra.mxu0 %v947
        %996 = vmatprep.subr.mxu0 0.0
        %997 = vmatpush2.msra.mxu0 0.0
        %998 = vmatprep.subr.mxu0 0.0
        %999 = vmatpush2.msra.mxu0 0.0
        %1000 = vmatprep.subr.mxu0 0.0
        %1001 = vmatpush2.msra.mxu0 0.0
        %1002 = vmatprep.subr.mxu0 0.0
        %1003 = vmatpush2.msra.mxu0 0.0
        %1004 = vmatprep.subr.mxu0 0.0
        %1005 = vmatpush2.msra.mxu0 0.0
        %1006 = vmatprep.subr.mxu0 0.0
        %1007 = vmatpush2.msra.mxu0 0.0
        %1008 = vmatprep.subr.mxu0 0.0
        %1009 = vmatpush2.msra.mxu0 0.0
        %1010 = vmatprep.subr.mxu0 0.0
        %1011 = vmatpush2.msra.mxu0 0.0
        %1012 = vmatprep.subr.mxu0 0.0
        %1013 = vmatpush2.msra.mxu0 0.0
        %1014 = vmatprep.subr.mxu0 0.0
        %1015 = vmatpush2.msra.mxu0 0.0
        %1016 = vmatprep.subr.mxu0 0.0
        %1017 = vmatpush2.msra.mxu0 0.0
        %1018 = vmatprep.subr.mxu0 0.0
        %1019 = vmatpush2.msra.mxu0 0.0
        %1020 = vmatprep.subr.mxu0 0.0
        %1021 = vmatpush2.msra.mxu0 0.0
        %1022 = vmatprep.subr.mxu0 0.0
        %1023 = vmatpush2.msra.mxu0 0.0
        %1024 = vmatprep.subr.mxu0 0.0
        %1025 = vmatpush2.msra.mxu0 0.0
        %1026 = vmatprep.subr.mxu0 0.0
        %1027 = vmatpush2.msra.mxu0 0.0
        %1028 = vmatprep.mubr.f32.mxu0 0.0
        %1029 = vmatmul.mubr.f32.gmra.mxu0 %v959
        %v1030 = vpop.f32.mrf.mxu0
        %v1031 = vadd.f32 %v956, %v1030
        %v1032 = vpop.f32.mrf.mxu0
        %1033 = vmatprep.mubr.f32.mxu0 0.0
        %1034 = vmatmul.mubr.f32.gmra.mxu0 %v962
        %v1035 = vpop.f32.mrf.mxu0
        %v1036 = vadd.f32 %v956, %v1035
        %v1037 = vpop.f32.mrf.mxu0
        %1038 = vdwg.mxu0
        %v1039 = vmax.f32 %v1031, 0.0
        %v1040 = vmax.f32 %v1036, 0.0
        %v1041 = vld [vmem:[%s11] sm:$0xff]
        %v1042 = vld [vmem:[%s11 + $0x8] sm:$0xff]
        %v1043 = vld [vmem:[%s11 + $0x10] sm:$0xff]
        %v1044 = vld [vmem:[%s11 + $0x18] sm:$0xff]
        %v1045 = vld [vmem:[%s12] sm:$0x1]
        %v1047 = vlaneseq
        %v1048 = vshrl.u32 %v1047, 7
        %v1049 = vsub.s32 0, %v1048
        %v1050 = vrot.slane %v1045, %v1049
        %v1053 = vsel %vm640, %v1039, 0
        %v1056 = vsel %vm640, %v1040, 0
        %1058 = vmatprep.subr.mxu0 0.0
        %1059 = vmatpush1.msra.mxu0 0.0
        %1060 = vmatprep.subr.mxu0 0.0
        %1061 = vmatpush1.msra.mxu0 0.0
        %1062 = vmatprep.subr.mxu0 0.0
        %1063 = vmatpush1.msra.mxu0 0.0
        %1064 = vmatprep.subr.mxu0 0.0
        %1065 = vmatpush1.msra.mxu0 0.0
        %1066 = vmatprep.subr.mxu0 0.0
        %1067 = vmatpush1.msra.mxu0 0.0
        %1068 = vmatprep.subr.mxu0 0.0
        %1069 = vmatpush1.msra.mxu0 0.0
        %1070 = vmatprep.subr.mxu0 0.0
        %1071 = vmatpush1.msra.mxu0 0.0
        %1072 = vmatprep.subr.mxu0 0.0
        %1073 = vmatpush1.msra.mxu0 0.0
        %1074 = vmatprep.subr.mxu0 0.0
        %1075 = vmatpush1.msra.mxu0 0.0
        %1076 = vmatprep.subr.mxu0 0.0
        %1077 = vmatpush1.msra.mxu0 0.0
        %1078 = vmatprep.subr.mxu0 0.0
        %1079 = vmatpush1.msra.mxu0 0.0
        %1080 = vmatprep.subr.mxu0 0.0
        %1081 = vmatpush1.msra.mxu0 0.0
        %1082 = vmatprep.subr.mxu0 0.0
        %1083 = vmatpush1.msra.mxu0 %v1044
        %1084 = vmatprep.subr.mxu0 0.0
        %1085 = vmatpush1.msra.mxu0 %v1043
        %1086 = vmatprep.subr.mxu0 0.0
        %1087 = vmatpush1.msra.mxu0 %v1042
        %1088 = vmatprep.subr.mxu0 0.0
        %1089 = vmatpush1.msra.mxu0 %v1041
        %1090 = vmatprep.subr.mxu0 0.0
        %1091 = vmatpush2.msra.mxu0 0.0
        %1092 = vmatprep.subr.mxu0 0.0
        %1093 = vmatpush2.msra.mxu0 0.0
        %1094 = vmatprep.subr.mxu0 0.0
        %1095 = vmatpush2.msra.mxu0 0.0
        %1096 = vmatprep.subr.mxu0 0.0
        %1097 = vmatpush2.msra.mxu0 0.0
        %1098 = vmatprep.subr.mxu0 0.0
        %1099 = vmatpush2.msra.mxu0 0.0
        %1100 = vmatprep.subr.mxu0 0.0
        %1101 = vmatpush2.msra.mxu0 0.0
        %1102 = vmatprep.subr.mxu0 0.0
        %1103 = vmatpush2.msra.mxu0 0.0
        %1104 = vmatprep.subr.mxu0 0.0
        %1105 = vmatpush2.msra.mxu0 0.0
        %1106 = vmatprep.subr.mxu0 0.0
        %1107 = vmatpush2.msra.mxu0 0.0
        %1108 = vmatprep.subr.mxu0 0.0
        %1109 = vmatpush2.msra.mxu0 0.0
        %1110 = vmatprep.subr.mxu0 0.0
        %1111 = vmatpush2.msra.mxu0 0.0
        %1112 = vmatprep.subr.mxu0 0.0
        %1113 = vmatpush2.msra.mxu0 0.0
        %1114 = vmatprep.subr.mxu0 0.0
        %1115 = vmatpush2.msra.mxu0 0.0
        %1116 = vmatprep.subr.mxu0 0.0
        %1117 = vmatpush2.msra.mxu0 0.0
        %1118 = vmatprep.subr.mxu0 0.0
        %1119 = vmatpush2.msra.mxu0 0.0
        %1120 = vmatprep.subr.mxu0 0.0
        %1121 = vmatpush2.msra.mxu0 0.0
        %1122 = vmatprep.mubr.f32.mxu0 0.0
        %1123 = vmatmul.mubr.f32.gmra.mxu0 %v1053
        %v1124 = vpop.f32.mrf.mxu0
        %v1125 = vadd.f32 %v1050, %v1124
        %v1126 = vpop.f32.mrf.mxu0
        %1127 = vmatprep.mubr.f32.mxu0 0.0
        %1128 = vmatmul.mubr.f32.gmra.mxu0 %v1056
        %v1129 = vpop.f32.mrf.mxu0
        %v1130 = vadd.f32 %v1050, %v1129
        %v1131 = vpop.f32.mrf.mxu0
        %1132 = vdwg.mxu0
        %v1133 = vtanh.pop %v1125
        %v1134 = vtanh.pop %v1130
        %1137 = vrot.lane.b32.xlu0 %v1133, 32
        %v1138 = vpop.permute.xlu0 %1137
        %1139 = vrot.lane.b32.xlu0 %v1134, 32
        %v1140 = vpop.permute.xlu0 %1139
        %v1143 = vsel %vm850, %v808, %v821
        %v1144 = vsel %vm850, %v813, %v823
        %v1145 = vsel %vm640, %v1143, %v1138
        %v1146 = vsel %vm640, %v1144, %v1140
        %vm1147 = vcmask 326656
        %1148 = vst.msk [vmem:[%s522] sm:$0xff] %vm1147, %v1145
        %1149 = vst.msk [vmem:[%s522 + $0x8] sm:$0xff] %vm1147, %v1146
        %s1150 = sand.u32 %s318, 1
        %s1151 = scalar_lea.sflag [#allocation4], %s1150
        %s1152 = sand.u32 %s318, 1
        %s1153 = smul.addr %s1152, 16
        %s1154 = scalar_lea.vmem [#allocation11], %s1153
        // Predicated region
        $region93: #{tpu_custom_call.1} parent=71 // pred_check
          %p1155 = pneg %p328
        $region94: #{tpu_custom_call.1} parent=71 // pred_check_branch
          %1157 = sbr.rel (%p1155) target = $region96
        $region95: #{tpu_custom_call.1} parent=71 // pred_region
          %s1158 = smul.u32 2, %s32
          %s1159 = ssub.s32 3, %s1158
          %p1160 = scmp.lt.s32.totalorder %s1159, 2
          %s1161 = scalar_select %p1160, %s1159, 2
          %s1162 = smul.u32 128, %s1161
          %s1164 = ssub.s32 256, %s1162
          %1165 = vsyncadd %s1151, %s1164
          %p1166 = scmp.ne.s32.totalorder 0, %s1162
          %s1167 = smul.addr %s1158, 128
          %s1168 = scalar_lea.hbm %s13, %s1167
          %s1169 = smul.u32 8, %s1161
          %s1170 = sshll.u32 %s1154, 4
          %s1171 = int_to_ptr.vmem [resolvable:$true] %s1170
          %s1172 = sshll.u32 %s1169, 4
          %1176 = dma.vmem_to_hbm [thread:$0]  (%p1166), %s1171, %s1172, %s1168, %s1151, 128, 128, 8
        $region96: #{tpu_custom_call.1} parent=71 // pred_fallthru
          _
      $region72: #{tpu_custom_call.1} parent=5 // pred_fallthru
        _
      %p1177 = scmp.le.s32.totalorder 2, %s27
      // Predicated region
      $region97: #{tpu_custom_call.1} parent=5 // pred_check
        %p1178 = pneg %p1177
      $region98: #{tpu_custom_call.1} parent=5 // pred_check_branch
        %1180 = sbr.rel (%p1178) target = $region100
      $region99: #{tpu_custom_call.1} parent=5 // pred_region
        %s1181 = ssub.s32 %s27, 2
        // Predicated region
        $region101: #{tpu_custom_call.1} parent=99 // pred_check
          %p1182 = pneg %p334
        $region102: #{tpu_custom_call.1} parent=99 // pred_check_branch
          %1184 = sbr.rel (%p1182) target = $region104
        $region103: #{tpu_custom_call.1} parent=99 // pred_region
          %s1185 = sand.u32 %s319, 1
          %s1186 = scalar_lea.sflag [#allocation4], %s1185
          %s1187 = sand.u32 %s319, 1
          %s1188 = smul.addr %s1187, 16
          %s1189 = scalar_lea.vmem [#allocation11], %s1188
          %1190 = dma.done %s1186, 256
        $region104: #{tpu_custom_call.1} parent=99 // pred_fallthru
          _
      $region100: #{tpu_custom_call.1} parent=5 // pred_fallthru
        _
    $region6: #{tpu_custom_call.1} parent=1 // loop_footer
      %s31 = sadd.s32 1, %s27
    $region7: #{tpu_custom_call.1} parent=1 // loop_footer_branch
      %26 = sbr.rel target = $region3
    $region8: #{tpu_custom_call.1} parent=1 // loop_exit
      _
    %1191 = vsyncpa [#allocation3], 1
    %s1192 = scalar_lea.sflag [#allocation3], 1
    %1193 = vsyncpa %s1192, 1
    %1194 = vsyncpa [#allocation6], 1
    %1195 = vsyncpa [#allocation9], 1
    %1196 = vsyncpa [#allocation4], 1
    %s1197 = scalar_lea.sflag [#allocation4], 1
    %1198 = vsyncpa %s1197, 1

</llo_original>
